<compile_context>
chip_gen: v5e
topology: v5e:2x2
jax: 0.10.0
libtpu: 0.0.40
codegen_flags: <defaults>
</compile_context>

<pallas_src>
import jax
import jax.numpy as jnp
from jax.experimental import pallas as pl
from jax.experimental.pallas import tpu as pltpu


def dueling_net_kernel(x_ref, w1_ref, b1_ref, w2_ref, b2_ref,
                       wva_ref, bva_ref, out_ref):
    x = x_ref[...]                                                    # (B, S)

    # common_layer: Linear -> ReLU -> Linear -> ReLU  (MXU matmul + VPU relu)
    h = jnp.dot(x, w1_ref[...], preferred_element_type=jnp.float32) + b1_ref[...]
    h = jnp.maximum(h, 0.0)
    h = jnp.dot(h, w2_ref[...], preferred_element_type=jnp.float32) + b2_ref[...]
    h = jnp.maximum(h, 0.0)

    # Fused value+advantage head: one matmul producing a lane-dense slab.
    # Column 0 = V, columns 1..ACTION_DIM = A, remaining columns = 0 (padding).
    va = jnp.dot(h, wva_ref[...], preferred_element_type=jnp.float32) + bva_ref[...]

    v = va[:, 0:1]                                   # (B, 1) value column
    col_mean = jnp.mean(va, axis=0, keepdims=True)   # (1, P) per-column batch mean
    # Elementwise over the whole slab; only cols [1, 1+ACTION_DIM) are consumed.
    out_ref[...] = va + v - col_mean                 # lane-dense, unmasked store


def _prepare_head_params(wv, bv, wa, ba):
    """Fuse + lane-pad the two heads:  (H,1)+(H,A) -> (H,P), P = mult of 128."""
    w_va = jnp.concatenate([wv, wa], axis=1)         # (H, 1+A)
    b_va = jnp.concatenate([bv, ba], axis=1)         # (1, 1+A)
    width = w_va.shape[1]
    padded = max(128, ((width + 127) // 128) * 128)
    pad = padded - width
    if pad:
        w_va = jnp.pad(w_va, ((0, 0), (0, pad)))
        b_va = jnp.pad(b_va, ((0, 0), (0, pad)))
    return w_va, b_va, padded


def dueling_net_forward(x, params):
    (w1, b1, w2, b2, wv, bv, wa, ba) = params
    B = x.shape[0]
    action_dim = wa.shape[1]

    # One-time (per-parameter-set) head fusion + lane padding.
    w_va, b_va, padded = _prepare_head_params(wv, bv, wa, ba)

    vmem = pl.BlockSpec(memory_space=pltpu.MemorySpace.VMEM)

    out_pad = pl.pallas_call(
        dueling_net_kernel,
        out_shape=jax.ShapeDtypeStruct((B, padded), jnp.float32),
        in_specs=[vmem] * 7,
        out_specs=vmem,
    )(x, w1, b1, w2, b2, w_va, b_va)

    # Columns [1, 1+ACTION_DIM) of the padded slab are A + V - A.mean(0).
    return out_pad[:, 1:1 + action_dim]


def init_params(key, state_dim, action_dim, hidden):
    """Deterministic init mimicking nn.Linear's uniform(-1/sqrt(fan_in), ...)."""
    def linear(k, fan_in, fan_out):
        kw, kb = jax.random.split(k)
        bound = 1.0 / jnp.sqrt(fan_in)
        w = jax.random.uniform(kw, (fan_in, fan_out), jnp.float32, -bound, bound)
        b = jax.random.uniform(kb, (1, fan_out), jnp.float32, -bound, bound)
        return w, b

    k1, k2, k3, k4 = jax.random.split(key, 4)
    w1, b1 = linear(k1, state_dim, hidden)
    w2, b2 = linear(k2, hidden, hidden)
    wv, bv = linear(k3, hidden, 1)
    wa, ba = linear(k4, hidden, action_dim)
    return (w1, b1, w2, b2, wv, bv, wa, ba)


def reference_forward(x, params):
    (w1, b1, w2, b2, wv, bv, wa, ba) = params
    h = jnp.maximum(x @ w1 + b1, 0.0)
    h = jnp.maximum(h @ w2 + b2, 0.0)
    V = h @ wv + bv
    A = h @ wa + ba
    return A + V - A.mean(axis=0, keepdims=True)


if __name__ == "__main__":
    STATE_DIM, ACTION_DIM, HIDDEN = 16, 4, 32
    BATCH = 8

    key = jax.random.PRNGKey(0)
    kx, kp = jax.random.split(key)
    x = jax.random.normal(kx, (BATCH, STATE_DIM), jnp.float32)
    params = init_params(kp, STATE_DIM, ACTION_DIM, HIDDEN)

    out = dueling_net_forward(x, params)
    out = jax.block_until_ready(out)

    ref = reference_forward(x, params)
    assert out.shape == (BATCH, ACTION_DIM)
    assert jnp.allclose(out, ref, atol=1e-5, rtol=1e-5), "mismatch vs JAX reference"

    print("KERNEL_OK")
</pallas_src>

<mosaic_0001>
module attributes {stable_mosaic.version = 11 : i64} {
  func.func @dueling_net_kernel(%arg0: memref<8x16xf32, #tpu.memory_space<vmem>>, %arg1: memref<16x32xf32, #tpu.memory_space<vmem>>, %arg2: memref<1x32xf32, #tpu.memory_space<vmem>>, %arg3: memref<32x32xf32, #tpu.memory_space<vmem>>, %arg4: memref<1x32xf32, #tpu.memory_space<vmem>>, %arg5: memref<32x128xf32, #tpu.memory_space<vmem>>, %arg6: memref<1x128xf32, #tpu.memory_space<vmem>>, %arg7: memref<8x128xf32, #tpu.memory_space<vmem>>) attributes {dimension_semantics = [], scalar_prefetch = 0 : i64, scratch_operands = 0 : i64, tpu.core_type = #tpu.core_type<tc>} {
    %c0 = arith.constant 0 : index
    %c0_0 = arith.constant 0 : index
    %0 = vector.load %arg0[%c0, %c0_0] : memref<8x16xf32, #tpu.memory_space<vmem>>, vector<8x16xf32>
    %c0_1 = arith.constant 0 : index
    %c0_2 = arith.constant 0 : index
    %1 = vector.load %arg1[%c0_1, %c0_2] : memref<16x32xf32, #tpu.memory_space<vmem>>, vector<16x32xf32>
    %cst = arith.constant dense<0.000000e+00> : vector<8x32xf32>
    %2 = tpu.matmul %0, %1, %cst {dimension_numbers = #tpu.dot_dimension_numbers<[1], [0], [0], [1], [0, 0, 1, 1], [], []>} : vector<8x16xf32>, vector<16x32xf32>, vector<8x32xf32> -> vector<8x32xf32>
    %c0_3 = arith.constant 0 : index
    %c0_4 = arith.constant 0 : index
    %3 = vector.load %arg2[%c0_3, %c0_4] : memref<1x32xf32, #tpu.memory_space<vmem>>, vector<1x32xf32>
    %4 = vector.broadcast %3 : vector<1x32xf32> to vector<8x32xf32>
    %5 = arith.addf %2, %4 : vector<8x32xf32>
    %cst_5 = arith.constant 0.000000e+00 : f32
    %6 = vector.broadcast %cst_5 : f32 to vector<8x32xf32>
    %7 = arith.maximumf %5, %6 : vector<8x32xf32>
    %c0_6 = arith.constant 0 : index
    %c0_7 = arith.constant 0 : index
    %8 = vector.load %arg3[%c0_6, %c0_7] : memref<32x32xf32, #tpu.memory_space<vmem>>, vector<32x32xf32>
    %cst_8 = arith.constant dense<0.000000e+00> : vector<8x32xf32>
    %9 = tpu.matmul %7, %8, %cst_8 {dimension_numbers = #tpu.dot_dimension_numbers<[1], [0], [0], [1], [0, 0, 1, 1], [], []>} : vector<8x32xf32>, vector<32x32xf32>, vector<8x32xf32> -> vector<8x32xf32>
    %c0_9 = arith.constant 0 : index
    %c0_10 = arith.constant 0 : index
    %10 = vector.load %arg4[%c0_9, %c0_10] : memref<1x32xf32, #tpu.memory_space<vmem>>, vector<1x32xf32>
    %11 = vector.broadcast %10 : vector<1x32xf32> to vector<8x32xf32>
    %12 = arith.addf %9, %11 : vector<8x32xf32>
    %cst_11 = arith.constant 0.000000e+00 : f32
    %13 = vector.broadcast %cst_11 : f32 to vector<8x32xf32>
    %14 = arith.maximumf %12, %13 : vector<8x32xf32>
    %c0_12 = arith.constant 0 : index
    %c0_13 = arith.constant 0 : index
    %15 = vector.load %arg5[%c0_12, %c0_13] : memref<32x128xf32, #tpu.memory_space<vmem>>, vector<32x128xf32>
    %cst_14 = arith.constant dense<0.000000e+00> : vector<8x128xf32>
    %16 = tpu.matmul %14, %15, %cst_14 {dimension_numbers = #tpu.dot_dimension_numbers<[1], [0], [0], [1], [0, 0, 1, 1], [], []>} : vector<8x32xf32>, vector<32x128xf32>, vector<8x128xf32> -> vector<8x128xf32>
    %c0_15 = arith.constant 0 : index
    %c0_16 = arith.constant 0 : index
    %17 = vector.load %arg6[%c0_15, %c0_16] : memref<1x128xf32, #tpu.memory_space<vmem>>, vector<1x128xf32>
    %18 = vector.broadcast %17 : vector<1x128xf32> to vector<8x128xf32>
    %19 = arith.addf %16, %18 : vector<8x128xf32>
    %20 = vector.extract_strided_slice %19 {offsets = [0, 0], sizes = [8, 1], strides = [1, 1]} : vector<8x128xf32> to vector<8x1xf32>
    %cst_17 = arith.constant dense<0.000000e+00> : vector<128xf32>
    %21 = vector.multi_reduction <add>, %19, %cst_17 [0] : vector<8x128xf32> to vector<128xf32>
    %22 = vector.shape_cast %21 : vector<128xf32> to vector<1x128xf32>
    %cst_18 = arith.constant 8.000000e+00 : f32
    %23 = vector.broadcast %cst_18 : f32 to vector<1x128xf32>
    %24 = arith.divf %22, %23 : vector<1x128xf32>
    %25 = vector.broadcast %20 : vector<8x1xf32> to vector<8x128xf32>
    %26 = arith.addf %19, %25 : vector<8x128xf32>
    %27 = vector.broadcast %24 : vector<1x128xf32> to vector<8x128xf32>
    %28 = arith.subf %26, %27 : vector<8x128xf32>
    %c0_19 = arith.constant 0 : index
    %c0_20 = arith.constant 0 : index
    %29 = vector.load %arg7[%c0_19, %c0_20] : memref<8x128xf32, #tpu.memory_space<vmem>>, vector<8x128xf32>
    tpu.vector_store %arg7[%c0_19, %c0_20], %28 {strides = array<i32>} : memref<8x128xf32, #tpu.memory_space<vmem>>, vector<8x128xf32>,
    return
  }
}

</mosaic_0001>

<llo_original>
// kernel: tpu_custom_call.1
$region0: #{tpu_custom_call.1}
  #allocation0 [shape = 'u32[]', space=smem, size = 0x4, offset = 0x4, fixed_abs, tag = 'smem constant byte address 0x4 - core index']
  #allocation1 [shape = 'u32[72,128]{1,0:T(1,128)}', space=vmem, size = 0x9000, scoped, tag = 'internal scratch']
  %s0 = inlined_call_operand.hbm [shape: f32[8,16], index: 0, kind: input, shape index: {}]
  %s1 = inlined_call_operand.hbm [shape: f32[16,32], index: 1, kind: input, shape index: {}]
  %s2 = inlined_call_operand.vmem [shape: f32[1,32], index: 2, kind: input, shape index: {}]
  %s3 = inlined_call_operand.hbm [shape: f32[32,32], index: 3, kind: input, shape index: {}]
  %s4 = inlined_call_operand.vmem [shape: f32[1,32], index: 4, kind: input, shape index: {}]
  %s5 = inlined_call_operand.hbm [shape: f32[32,128], index: 5, kind: input, shape index: {}]
  %s6 = inlined_call_operand.vmem [shape: f32[1,128], index: 6, kind: input, shape index: {}]
  %s7 = inlined_call_operand.hbm [shape: f32[8,128], index: 7, kind: output, shape index: {}]
  %s8 = sld [smem:[#allocation0]]
  $region54: #{tpu_custom_call.1} parent=0
    _
  %s10 = ssub.s32 1, %s8
  %s11 = scalar_select 0, %s10, %s8
  $region1: #{tpu_custom_call.1} parent=0
    #allocation2 [shape = 'u8[4096]{0}', space=vmem, size = 0x1000, scoped, tag = 'input window, operand 0, single buffered']
    #allocation3 [shape = 's32[1]{0}', space=sflag, size = 0x4, scoped, tag = 'scoped memory for tpu_custom_call.1']
    #allocation4 [shape = 's32[1]{0}', space=sflag, size = 0x4, scoped, tag = 'scoped memory for tpu_custom_call.1']
    #allocation5 [shape = 'u8[8192]{0}', space=vmem, size = 0x2000, scoped, tag = 'input window, operand 1, single buffered']
    #allocation6 [shape = 's32[1]{0}', space=sflag, size = 0x4, scoped, tag = 'scoped memory for tpu_custom_call.1']
    #allocation7 [shape = 'u8[16384]{0}', space=vmem, size = 0x4000, scoped, tag = 'input window, operand 3, single buffered']
    #allocation8 [shape = 'u8[16384]{0}', space=vmem, size = 0x4000, scoped, tag = 'input window, operand 5, single buffered']
    #allocation9 [shape = 's32[1]{0}', space=sflag, size = 0x4, scoped, tag = 'scoped memory for tpu_custom_call.1']
    #allocation10 [shape = 'u8[4096]{0}', space=vmem, size = 0x1000, scoped, tag = 'output window, operand 0, single buffered']
    %12 = vsyncpa [#allocation3], 0
    %13 = vsyncpa [#allocation6], 0
    %14 = vsyncpa [#allocation9], 0
    %15 = vsyncpa [#allocation4], 0
    // Predicated region
    $region2: #{tpu_custom_call.1} parent=1 // pred_check
      _
    $region3: #{tpu_custom_call.1} parent=1 // pred_check_branch
      %17 = sbr.rel (0) target = $region5
    $region4: #{tpu_custom_call.1} parent=1 // pred_region
      %19 = vsyncadd [#allocation3], 0
      %s21 = sshll.u32 %s0, 4
      %s22 = int_to_ptr.hbm [resolvable:$true] %s21
      %s23 = sshll.u32 [#allocation2], 4
      %s24 = int_to_ptr.vmem [resolvable:$true] %s23
      %26 = dma.hbm_to_vmem [thread:$0]  %s22, 128, %s24, [#allocation3]
    $region5: #{tpu_custom_call.1} parent=1 // pred_fallthru
      _
    // Predicated region
    $region6: #{tpu_custom_call.1} parent=1 // pred_check
      _
    $region7: #{tpu_custom_call.1} parent=1 // pred_check_branch
      %28 = sbr.rel (0) target = $region9
    $region8: #{tpu_custom_call.1} parent=1 // pred_region
      %30 = vsyncadd [#allocation6], 0
      %s31 = sshll.u32 %s1, 4
      %s32 = int_to_ptr.hbm [resolvable:$true] %s31
      %s33 = sshll.u32 [#allocation5], 4
      %s34 = int_to_ptr.vmem [resolvable:$true] %s33
      %39 = dma.hbm_to_vmem [thread:$0]  %s32, 256, %s34, [#allocation6], 128, 128, 8
    $region9: #{tpu_custom_call.1} parent=1 // pred_fallthru
      _
    // Predicated region
    $region10: #{tpu_custom_call.1} parent=1 // pred_check
      _
    $region11: #{tpu_custom_call.1} parent=1 // pred_check_branch
      %41 = sbr.rel (0) target = $region13
    $region12: #{tpu_custom_call.1} parent=1 // pred_region
      _
    $region13: #{tpu_custom_call.1} parent=1 // pred_fallthru
      _
    // Predicated region
    $region14: #{tpu_custom_call.1} parent=1 // pred_check
      _
    $region15: #{tpu_custom_call.1} parent=1 // pred_check_branch
      %43 = sbr.rel (0) target = $region17
    $region16: #{tpu_custom_call.1} parent=1 // pred_region
      %45 = vsyncadd [#allocation6], 0
      %s46 = sshll.u32 %s3, 4
      %s47 = int_to_ptr.hbm [resolvable:$true] %s46
      %s48 = sshll.u32 [#allocation7], 4
      %s49 = int_to_ptr.vmem [resolvable:$true] %s48
      %54 = dma.hbm_to_vmem [thread:$0]  %s47, 512, %s49, [#allocation6], 128, 128, 8
    $region17: #{tpu_custom_call.1} parent=1 // pred_fallthru
      _
    // Predicated region
    $region18: #{tpu_custom_call.1} parent=1 // pred_check
      _
    $region19: #{tpu_custom_call.1} parent=1 // pred_check_branch
      %56 = sbr.rel (0) target = $region21
    $region20: #{tpu_custom_call.1} parent=1 // pred_region
      _
    $region21: #{tpu_custom_call.1} parent=1 // pred_fallthru
      _
    // Predicated region
    $region22: #{tpu_custom_call.1} parent=1 // pred_check
      _
    $region23: #{tpu_custom_call.1} parent=1 // pred_check_branch
      %58 = sbr.rel (0) target = $region25
    $region24: #{tpu_custom_call.1} parent=1 // pred_region
      %60 = vsyncadd [#allocation9], 0
      %s61 = sshll.u32 %s5, 4
      %s62 = int_to_ptr.hbm [resolvable:$true] %s61
      %s63 = sshll.u32 [#allocation8], 4
      %s64 = int_to_ptr.vmem [resolvable:$true] %s63
      %69 = dma.hbm_to_vmem [thread:$0]  %s62, 512, %s64, [#allocation9], 128, 128, 8
    $region25: #{tpu_custom_call.1} parent=1 // pred_fallthru
      _
    // Predicated region
    $region26: #{tpu_custom_call.1} parent=1 // pred_check
      _
    $region27: #{tpu_custom_call.1} parent=1 // pred_check_branch
      %71 = sbr.rel (0) target = $region29
    $region28: #{tpu_custom_call.1} parent=1 // pred_region
      _
    $region29: #{tpu_custom_call.1} parent=1 // pred_fallthru
      _
    // Predicated region
    $region30: #{tpu_custom_call.1} parent=1 // pred_check
      _
    $region31: #{tpu_custom_call.1} parent=1 // pred_check_branch
      %73 = sbr.rel (0) target = $region33
    $region32: #{tpu_custom_call.1} parent=1 // pred_region
      %75 = dma.done [#allocation3], 128
    $region33: #{tpu_custom_call.1} parent=1 // pred_fallthru
      _
    // Predicated region
    $region34: #{tpu_custom_call.1} parent=1 // pred_check
      _
    $region35: #{tpu_custom_call.1} parent=1 // pred_check_branch
      %77 = sbr.rel (0) target = $region37
    $region36: #{tpu_custom_call.1} parent=1 // pred_region
      %79 = dma.done [#allocation6], 256
    $region37: #{tpu_custom_call.1} parent=1 // pred_fallthru
      _
    // Predicated region
    $region38: #{tpu_custom_call.1} parent=1 // pred_check
      _
    $region39: #{tpu_custom_call.1} parent=1 // pred_check_branch
      %81 = sbr.rel (0) target = $region41
    $region40: #{tpu_custom_call.1} parent=1 // pred_region
      %83 = dma.done [#allocation6], 512
    $region41: #{tpu_custom_call.1} parent=1 // pred_fallthru
      _
    // Predicated region
    $region42: #{tpu_custom_call.1} parent=1 // pred_check
      _
    $region43: #{tpu_custom_call.1} parent=1 // pred_check_branch
      %85 = sbr.rel (0) target = $region45
    $region44: #{tpu_custom_call.1} parent=1 // pred_region
      %87 = dma.done [#allocation9], 512
    $region45: #{tpu_custom_call.1} parent=1 // pred_fallthru
      _
    %v88 = vld [vmem:[#allocation2] sm:$0xff]
    %v89 = vld [vmem:[#allocation5] sm:$0xff]
    %v90 = vld [vmem:[#allocation5 + $0x8] sm:$0xff]
    %v91 = vld [vmem:[%s2] sm:$0x1]
    %v93 = vperm.slane %v91, 0
    %vm95 = vcmask 130048
    %v97 = vsel %vm95, %v88, 0
    %99 = vmatpush.msra.mxu0 0.0
    %100 = vmatpush.msra.mxu0 0.0
    %101 = vmatpush.msra.mxu0 0.0
    %102 = vmatpush.msra.mxu0 0.0
    %103 = vmatpush.msra.mxu0 0.0
    %104 = vmatpush.msra.mxu0 0.0
    %105 = vmatpush.msra.mxu0 0.0
    %106 = vmatpush.msra.mxu0 0.0
    %107 = vmatpush.msra.mxu0 0.0
    %108 = vmatpush.msra.mxu0 0.0
    %109 = vmatpush.msra.mxu0 0.0
    %110 = vmatpush.msra.mxu0 0.0
    %111 = vmatpush.msra.mxu0 0.0
    %112 = vmatpush.msra.mxu0 0.0
    %113 = vmatpush.msra.mxu0 %v90
    %114 = vmatpush.msra.mxu0 %v89
    %115 = vmatmul.f32.gmra.mxu0 %v97
    %v116 = vpop.f32.mrf.mxu0
    %v117 = vadd.f32 %v93, %v116
    %118 = vdwg.mxu0
    %v119 = vmax.f32 %v117, 0.0
    %v120 = vld [vmem:[#allocation7] sm:$0xff]
    %v121 = vld [vmem:[#allocation7 + $0x8] sm:$0xff]
    %v122 = vld [vmem:[#allocation7 + $0x10] sm:$0xff]
    %v123 = vld [vmem:[#allocation7 + $0x18] sm:$0xff]
    %v124 = vld [vmem:[%s4] sm:$0x1]
    %v126 = vperm.slane %v124, 0
    %vm128 = vcmask 261120
    %v130 = vsel %vm128, %v119, 0
    %132 = vmatpush.msra.mxu0 0.0
    %133 = vmatpush.msra.mxu0 0.0
    %134 = vmatpush.msra.mxu0 0.0
    %135 = vmatpush.msra.mxu0 0.0
    %136 = vmatpush.msra.mxu0 0.0
    %137 = vmatpush.msra.mxu0 0.0
    %138 = vmatpush.msra.mxu0 0.0
    %139 = vmatpush.msra.mxu0 0.0
    %140 = vmatpush.msra.mxu0 0.0
    %141 = vmatpush.msra.mxu0 0.0
    %142 = vmatpush.msra.mxu0 0.0
    %143 = vmatpush.msra.mxu0 0.0
    %144 = vmatpush.msra.mxu0 %v123
    %145 = vmatpush.msra.mxu0 %v122
    %146 = vmatpush.msra.mxu0 %v121
    %147 = vmatpush.msra.mxu0 %v120
    %148 = vmatmul.f32.gmra.mxu0 %v130
    %v149 = vpop.f32.mrf.mxu0
    %v150 = vadd.f32 %v126, %v149
    %151 = vdwg.mxu0
    %v152 = vmax.f32 %v150, 0.0
    %v153 = vld [vmem:[#allocation8] sm:$0xff]
    %v154 = vld [vmem:[#allocation8 + $0x8] sm:$0xff]
    %v155 = vld [vmem:[#allocation8 + $0x10] sm:$0xff]
    %v156 = vld [vmem:[#allocation8 + $0x18] sm:$0xff]
    %v157 = vld [vmem:[%s6] sm:$0x1]
    %v159 = vperm.slane %v157, 0
    %v162 = vsel %vm128, %v152, 0
    %164 = vmatpush.msra.mxu0 0.0
    %165 = vmatpush.msra.mxu0 0.0
    %166 = vmatpush.msra.mxu0 0.0
    %167 = vmatpush.msra.mxu0 0.0
    %168 = vmatpush.msra.mxu0 0.0
    %169 = vmatpush.msra.mxu0 0.0
    %170 = vmatpush.msra.mxu0 0.0
    %171 = vmatpush.msra.mxu0 0.0
    %172 = vmatpush.msra.mxu0 0.0
    %173 = vmatpush.msra.mxu0 0.0
    %174 = vmatpush.msra.mxu0 0.0
    %175 = vmatpush.msra.mxu0 0.0
    %176 = vmatpush.msra.mxu0 %v156
    %177 = vmatpush.msra.mxu0 %v155
    %178 = vmatpush.msra.mxu0 %v154
    %179 = vmatpush.msra.mxu0 %v153
    %180 = vmatmul.f32.gmra.mxu0 %v162
    %v181 = vpop.f32.mrf.mxu0
    %v182 = vadd.f32 %v159, %v181
    %183 = vdwg.mxu0
    %v184 = vrot.slane %v182, 4
    %v185 = vadd.f32 %v182, %v184
    %v186 = vrot.slane %v185, 2
    %v187 = vadd.f32 %v185, %v186
    %v188 = vrot.slane %v187, 1
    %v189 = vadd.f32 %v187, %v188
    %v190 = vrcp.pop 8.0
    %v191 = vmul.f32 8.0, %v190
    %v192 = vsub.f32 1.0, %v191
    %v193 = vmul.f32 %v190, %v192
    %v194 = vadd.f32 %v190, %v193
    %vm195 = vweird.f32 %v190
    %v196 = vsel %vm195, %v190, %v194
    %v197 = vmul.f32 %v189, %v196
    %199 = vset.pattern.permute.xlu0 0
    %200 = vperm.xlu0 %199, %v182
    %v201 = vpop.permute.xlu0 %200
    %v203 = vadd.f32 %v182, %v201
    %v204 = vsub.f32 %v203, %v197
    %205 = vst [vmem:[#allocation10] sm:$0xff] %v204
    // Predicated region
    $region46: #{tpu_custom_call.1} parent=1 // pred_check
      _
    $region47: #{tpu_custom_call.1} parent=1 // pred_check_branch
      %207 = sbr.rel (0) target = $region49
    $region48: #{tpu_custom_call.1} parent=1 // pred_region
      %209 = vsyncadd [#allocation4], 0
      %s211 = sshll.u32 [#allocation10], 4
      %s212 = int_to_ptr.vmem [resolvable:$true] %s211
      %s213 = sshll.u32 %s7, 4
      %s214 = int_to_ptr.hbm [resolvable:$true] %s213
      %216 = dma.vmem_to_hbm [thread:$0]  %s212, 128, %s214, [#allocation4]
    $region49: #{tpu_custom_call.1} parent=1 // pred_fallthru
      _
    // Predicated region
    $region50: #{tpu_custom_call.1} parent=1 // pred_check
      _
    $region51: #{tpu_custom_call.1} parent=1 // pred_check_branch
      %218 = sbr.rel (0) target = $region53
    $region52: #{tpu_custom_call.1} parent=1 // pred_region
      %220 = dma.done [#allocation4], 128
    $region53: #{tpu_custom_call.1} parent=1 // pred_fallthru
      _
    %221 = vsyncpa [#allocation3], 1
    %222 = vsyncpa [#allocation6], 1
    %223 = vsyncpa [#allocation9], 1
    %224 = vsyncpa [#allocation4], 1

</llo_original>
